<compile_context>
chip_gen: v6e
topology: v6e:2x2x1
jax: 0.10.0
libtpu: 0.0.40
codegen_flags: <defaults>
</compile_context>

<pallas_src>
import functools

import jax
import jax.numpy as jnp
from jax import lax
from jax.experimental import pallas as pl
from jax.experimental.pallas import tpu as pltpu


def _ce_partial_sum(x_ref, y_ref, col_mask):
    """Partial CE sum for one batch tile, transposed (C, TB) layout.

    x_ref:    (C, TB) logits in native dtype (upcast in-vreg to f32)
    y_ref:    (1, TB) int32 labels
    col_mask: (1, TB) f32, 1.0 for valid batch columns, 0.0 for padding
    returns scalar f32: sum over valid columns of (logsumexp - picked).
    """
    x = x_ref[...].astype(jnp.float32)              # single load, upcast in-vreg
    C, TB = x.shape
    y = y_ref[...]                                  # (1, TB) int32

    m = jnp.max(x, axis=0, keepdims=True)           # (1, TB) cross-sublane max
    row = lax.broadcasted_iota(jnp.int32, (C, TB), 0)
    onehot = row == y                               # sublane-broadcast compare

    # Fused pass over the same x tile: exp-sum and picked-logit extraction.
    e = jnp.exp(x - m)                              # EUP
    se = jnp.sum(e, axis=0, keepdims=True)          # (1, TB)
    picked = jnp.sum(jnp.where(onehot, x, 0.0), axis=0, keepdims=True)

    lse = jnp.log(se) + m                           # (1, TB)
    per_ex = (lse - picked) * col_mask              # (1, TB), lane-dense
    return jnp.sum(per_ex)


def vin2param_loss_kernel(cb_ref, cm_ref, co_ref,
                          cb_lab_ref, cm_lab_ref, co_lab_ref,
                          out_ref, acc_ref, *, batch, tb):
    i = pl.program_id(0)

    @pl.when(i == 0)
    def _():
        acc_ref[0] = jnp.float32(0.0)

    # Mask padded batch columns (only relevant on the last tile).
    lane = lax.broadcasted_iota(jnp.int32, (1, tb), 1)
    col_mask = ((lane + i * tb) < batch).astype(jnp.float32)

    s = (_ce_partial_sum(cb_ref, cb_lab_ref, col_mask)
         + _ce_partial_sum(cm_ref, cm_lab_ref, col_mask)
         + _ce_partial_sum(co_ref, co_lab_ref, col_mask))
    acc_ref[0] += s

    @pl.when(i == pl.num_programs(0) - 1)
    def _():
        # mean-per-head then sum == total-sum / B (same B for every head)
        out_ref[0, 0] = acc_ref[0] * jnp.float32(1.0 / batch)


def vin2param_loss(carbrand_logit, carmodel_logit, color_logit,
                   carbrand_label, carmodel_label, color_label):
    B = carbrand_logit.shape[0]
    c_brand = carbrand_logit.shape[1]
    c_model = carmodel_logit.shape[1]
    c_color = color_logit.shape[1]
    sum_c = c_brand + c_model + c_color

    # ---- batch tile (lane axis) sizing: multiple of 128, VMEM-budget aware --
    # 2 (double-buffer) * TB * sum_c * 4B (f32 worst case) kept under ~24 MiB
    # so it also fits the v7x 32 MiB scoped-VMEM default (v5e/v6e have more).
    vmem_budget = 24 * 1024 * 1024
    tb_cap = max(128, (vmem_budget // (2 * 4 * max(sum_c, 1)) // 128) * 128)
    tb = min(1024, tb_cap)
    if B <= tb:
        tb = max(128, -(-B // 128) * 128)
    b_pad = -(-B // tb) * tb
    num_tiles = b_pad // tb

    # ---- layout plumbing: batch on the lane axis, labels as lane vectors ----
    def prep_logits(x):
        xt = jnp.swapaxes(x, 0, 1)                       # (C, B), native dtype
        return jnp.pad(xt, ((0, 0), (0, b_pad - B)))

    def prep_labels(y):
        y = y.astype(jnp.int32).reshape(1, -1)           # (1, B)
        return jnp.pad(y, ((0, 0), (0, b_pad - B)), constant_values=-1)

    kernel = functools.partial(vin2param_loss_kernel, batch=B, tb=tb)

    itemsize = jnp.dtype(carbrand_logit.dtype).itemsize
    cost = pl.CostEstimate(
        flops=5 * B * sum_c,
        transcendentals=B * sum_c,
        bytes_accessed=B * sum_c * itemsize + 3 * B * 4 + 4,
    )

    out = pl.pallas_call(
        kernel,
        out_shape=jax.ShapeDtypeStruct((1, 1), jnp.float32),
        grid_spec=pltpu.PrefetchScalarGridSpec(
            num_scalar_prefetch=0,
            grid=(num_tiles,),
            in_specs=[
                pl.BlockSpec((c_brand, tb), lambda i: (0, i)),
                pl.BlockSpec((c_model, tb), lambda i: (0, i)),
                pl.BlockSpec((c_color, tb), lambda i: (0, i)),
                pl.BlockSpec((1, tb), lambda i: (0, i)),
                pl.BlockSpec((1, tb), lambda i: (0, i)),
                pl.BlockSpec((1, tb), lambda i: (0, i)),
            ],
            out_specs=pl.BlockSpec(memory_space=pltpu.SMEM),
            scratch_shapes=[pltpu.SMEM((1,), jnp.float32)],
        ),
        compiler_params=pltpu.CompilerParams(
            dimension_semantics=("arbitrary",),
            vmem_limit_bytes=32 * 1024 * 1024,
        ),
        cost_estimate=cost,
    )(prep_logits(carbrand_logit),
      prep_logits(carmodel_logit),
      prep_logits(color_logit),
      prep_labels(carbrand_label),
      prep_labels(carmodel_label),
      prep_labels(color_label))
    return out[0, 0]


def _reference_loss(cb_logit, cm_logit, co_logit, cb_lab, cm_lab, co_lab):
    def ce(x, y):
        x = x.astype(jnp.float32)
        lse = jax.nn.logsumexp(x, axis=-1)
        picked = jnp.take_along_axis(x, y[:, None].astype(jnp.int32), axis=-1)[:, 0]
        return jnp.mean(lse - picked)
    return ce(cb_logit, cb_lab) + ce(cm_logit, cm_lab) + ce(co_logit, co_lab)


if __name__ == "__main__":
    key = jax.random.PRNGKey(0)
    B = 8
    N_BRAND, N_MODEL, N_COLOR = 16, 32, 8

    k1, k2, k3, k4, k5, k6 = jax.random.split(key, 6)
    carbrand_logit = jax.random.normal(k1, (B, N_BRAND), dtype=jnp.float32)
    carmodel_logit = jax.random.normal(k2, (B, N_MODEL), dtype=jnp.float32)
    color_logit    = jax.random.normal(k3, (B, N_COLOR), dtype=jnp.float32)
    carbrand_label = jax.random.randint(k4, (B,), 0, N_BRAND, dtype=jnp.int32)
    carmodel_label = jax.random.randint(k5, (B,), 0, N_MODEL, dtype=jnp.int32)
    color_label    = jax.random.randint(k6, (B,), 0, N_COLOR, dtype=jnp.int32)

    loss = vin2param_loss(carbrand_logit, carmodel_logit, color_logit,
                          carbrand_label, carmodel_label, color_label)
    loss = jax.block_until_ready(loss)

    ref = _reference_loss(carbrand_logit, carmodel_logit, color_logit,
                          carbrand_label, carmodel_label, color_label)
    assert jnp.allclose(loss, ref, rtol=1e-5, atol=1e-5), (loss, ref)

    print("KERNEL_OK")
</pallas_src>

<mosaic_0001>
module attributes {stable_mosaic.version = 11 : i64} {
  func.func @vin2param_loss_kernel(%arg0: i32, %arg1: memref<16x128xf32, #tpu.memory_space<vmem>>, %arg2: memref<32x128xf32, #tpu.memory_space<vmem>>, %arg3: memref<8x128xf32, #tpu.memory_space<vmem>>, %arg4: memref<1x128xi32, #tpu.memory_space<vmem>>, %arg5: memref<1x128xi32, #tpu.memory_space<vmem>>, %arg6: memref<1x128xi32, #tpu.memory_space<vmem>>, %arg7: memref<1x1xf32, #tpu.memory_space<smem>>, %arg8: memref<1xf32, #tpu.memory_space<smem>>) attributes {dimension_semantics = [#tpu.dimension_semantics<arbitrary>], iteration_bounds = array<i64: 1>, scalar_prefetch = 0 : i64, scratch_operands = 1 : i64, tpu.core_type = #tpu.core_type<tc>, window_params = [{transform_indices = @transform_0, window_bounds = array<i64: 16, 128>}, {transform_indices = @transform_1, window_bounds = array<i64: 32, 128>}, {transform_indices = @transform_2, window_bounds = array<i64: 8, 128>}, {transform_indices = @transform_3, window_bounds = array<i64: 1, 128>}, {transform_indices = @transform_4, window_bounds = array<i64: 1, 128>}, {transform_indices = @transform_5, window_bounds = array<i64: 1, 128>}, {transform_indices = @transform_6, window_bounds = array<i64: 1, 1>}]} {
    %c0_i32 = arith.constant 0 : i32
    %0 = arith.cmpi eq, %arg0, %c0_i32 : i32
    %1 = arith.extui %0 : i1 to i32
    %c0_i32_0 = arith.constant 0 : i32
    %2 = arith.cmpi ne, %1, %c0_i32_0 : i32
    scf.if %2 {
      %cst_30 = arith.constant 0.000000e+00 : f32
      %c0_31 = arith.constant 0 : index
      %91 = memref.load %arg8[%c0_31] : memref<1xf32, #tpu.memory_space<smem>>
      memref.store %cst_30, %arg8[%c0_31] : memref<1xf32, #tpu.memory_space<smem>>
    } else {
    }
    %3 = tpu.iota {dimensions = array<i32: 1>} : vector<1x128xi32>
    %c128_i32 = arith.constant 128 : i32
    %4 = arith.muli %arg0, %c128_i32 : i32
    %5 = vector.broadcast %4 : i32 to vector<1x128xi32>
    %6 = arith.addi %3, %5 : vector<1x128xi32>
    %c8_i32 = arith.constant 8 : i32
    %7 = vector.broadcast %c8_i32 : i32 to vector<1x128xi32>
    %8 = arith.cmpi slt, %6, %7 : vector<1x128xi32>
    %9 = arith.extui %8 : vector<1x128xi1> to vector<1x128xi32>
    %10 = arith.sitofp %9 : vector<1x128xi32> to vector<1x128xf32>
    %c0 = arith.constant 0 : index
    %c0_1 = arith.constant 0 : index
    %11 = vector.load %arg1[%c0, %c0_1] : memref<16x128xf32, #tpu.memory_space<vmem>>, vector<16x128xf32>
    %c0_2 = arith.constant 0 : index
    %c0_3 = arith.constant 0 : index
    %12 = vector.load %arg4[%c0_2, %c0_3] : memref<1x128xi32, #tpu.memory_space<vmem>>, vector<1x128xi32>
    %cst = arith.constant dense<0xFF800000> : vector<128xf32>
    %13 = vector.multi_reduction <maximumf>, %11, %cst [0] : vector<16x128xf32> to vector<128xf32>
    %14 = vector.shape_cast %13 : vector<128xf32> to vector<1x128xf32>
    %15 = tpu.iota {dimensions = array<i32: 0>} : vector<16x128xi32>
    %16 = vector.broadcast %12 : vector<1x128xi32> to vector<16x128xi32>
    %17 = arith.cmpi eq, %15, %16 : vector<16x128xi32>
    %18 = vector.broadcast %14 : vector<1x128xf32> to vector<16x128xf32>
    %19 = arith.subf %11, %18 : vector<16x128xf32>
    %20 = math.exp %19 : vector<16x128xf32>
    %cst_4 = arith.constant dense<0.000000e+00> : vector<128xf32>
    %21 = vector.multi_reduction <add>, %20, %cst_4 [0] : vector<16x128xf32> to vector<128xf32>
    %22 = vector.shape_cast %21 : vector<128xf32> to vector<1x128xf32>
    %cst_5 = arith.constant 0.000000e+00 : f32
    %23 = vector.broadcast %cst_5 : f32 to vector<16x128xf32>
    %24 = arith.select %17, %11, %23 : vector<16x128xi1>, vector<16x128xf32>
    %cst_6 = arith.constant dense<0.000000e+00> : vector<128xf32>
    %25 = vector.multi_reduction <add>, %24, %cst_6 [0] : vector<16x128xf32> to vector<128xf32>
    %26 = vector.shape_cast %25 : vector<128xf32> to vector<1x128xf32>
    %27 = math.log %22 : vector<1x128xf32>
    %28 = arith.addf %27, %14 : vector<1x128xf32>
    %29 = arith.subf %28, %26 : vector<1x128xf32>
    %30 = arith.mulf %29, %10 : vector<1x128xf32>
    %31 = vector.shape_cast %30 : vector<1x128xf32> to vector<1x1x128xf32>
    %cst_7 = arith.constant dense<0.000000e+00> : vector<1xf32>
    %32 = vector.multi_reduction <add>, %31, %cst_7 [1, 2] : vector<1x1x128xf32> to vector<1xf32>
    %33 = vector.shape_cast %32 : vector<1xf32> to vector<1x1x1xf32>
    %34 = vector.extract %33[0, 0, 0] : f32 from vector<1x1x1xf32>
    %c0_8 = arith.constant 0 : index
    %c0_9 = arith.constant 0 : index
    %35 = vector.load %arg2[%c0_8, %c0_9] : memref<32x128xf32, #tpu.memory_space<vmem>>, vector<32x128xf32>
    %c0_10 = arith.constant 0 : index
    %c0_11 = arith.constant 0 : index
    %36 = vector.load %arg5[%c0_10, %c0_11] : memref<1x128xi32, #tpu.memory_space<vmem>>, vector<1x128xi32>
    %cst_12 = arith.constant dense<0xFF800000> : vector<128xf32>
    %37 = vector.multi_reduction <maximumf>, %35, %cst_12 [0] : vector<32x128xf32> to vector<128xf32>
    %38 = vector.shape_cast %37 : vector<128xf32> to vector<1x128xf32>
    %39 = tpu.iota {dimensions = array<i32: 0>} : vector<32x128xi32>
    %40 = vector.broadcast %36 : vector<1x128xi32> to vector<32x128xi32>
    %41 = arith.cmpi eq, %39, %40 : vector<32x128xi32>
    %42 = vector.broadcast %38 : vector<1x128xf32> to vector<32x128xf32>
    %43 = arith.subf %35, %42 : vector<32x128xf32>
    %44 = math.exp %43 : vector<32x128xf32>
    %cst_13 = arith.constant dense<0.000000e+00> : vector<128xf32>
    %45 = vector.multi_reduction <add>, %44, %cst_13 [0] : vector<32x128xf32> to vector<128xf32>
    %46 = vector.shape_cast %45 : vector<128xf32> to vector<1x128xf32>
    %cst_14 = arith.constant 0.000000e+00 : f32
    %47 = vector.broadcast %cst_14 : f32 to vector<32x128xf32>
    %48 = arith.select %41, %35, %47 : vector<32x128xi1>, vector<32x128xf32>
    %cst_15 = arith.constant dense<0.000000e+00> : vector<128xf32>
    %49 = vector.multi_reduction <add>, %48, %cst_15 [0] : vector<32x128xf32> to vector<128xf32>
    %50 = vector.shape_cast %49 : vector<128xf32> to vector<1x128xf32>
    %51 = math.log %46 : vector<1x128xf32>
    %52 = arith.addf %51, %38 : vector<1x128xf32>
    %53 = arith.subf %52, %50 : vector<1x128xf32>
    %54 = arith.mulf %53, %10 : vector<1x128xf32>
    %55 = vector.shape_cast %54 : vector<1x128xf32> to vector<1x1x128xf32>
    %cst_16 = arith.constant dense<0.000000e+00> : vector<1xf32>
    %56 = vector.multi_reduction <add>, %55, %cst_16 [1, 2] : vector<1x1x128xf32> to vector<1xf32>
    %57 = vector.shape_cast %56 : vector<1xf32> to vector<1x1x1xf32>
    %58 = vector.extract %57[0, 0, 0] : f32 from vector<1x1x1xf32>
    %59 = arith.addf %34, %58 : f32
    %c0_17 = arith.constant 0 : index
    %c0_18 = arith.constant 0 : index
    %60 = vector.load %arg3[%c0_17, %c0_18] : memref<8x128xf32, #tpu.memory_space<vmem>>, vector<8x128xf32>
    %c0_19 = arith.constant 0 : index
    %c0_20 = arith.constant 0 : index
    %61 = vector.load %arg6[%c0_19, %c0_20] : memref<1x128xi32, #tpu.memory_space<vmem>>, vector<1x128xi32>
    %cst_21 = arith.constant dense<0xFF800000> : vector<128xf32>
    %62 = vector.multi_reduction <maximumf>, %60, %cst_21 [0] : vector<8x128xf32> to vector<128xf32>
    %63 = vector.shape_cast %62 : vector<128xf32> to vector<1x128xf32>
    %64 = tpu.iota {dimensions = array<i32: 0>} : vector<8x128xi32>
    %65 = vector.broadcast %61 : vector<1x128xi32> to vector<8x128xi32>
    %66 = arith.cmpi eq, %64, %65 : vector<8x128xi32>
    %67 = vector.broadcast %63 : vector<1x128xf32> to vector<8x128xf32>
    %68 = arith.subf %60, %67 : vector<8x128xf32>
    %69 = math.exp %68 : vector<8x128xf32>
    %cst_22 = arith.constant dense<0.000000e+00> : vector<128xf32>
    %70 = vector.multi_reduction <add>, %69, %cst_22 [0] : vector<8x128xf32> to vector<128xf32>
    %71 = vector.shape_cast %70 : vector<128xf32> to vector<1x128xf32>
    %cst_23 = arith.constant 0.000000e+00 : f32
    %72 = vector.broadcast %cst_23 : f32 to vector<8x128xf32>
    %73 = arith.select %66, %60, %72 : vector<8x128xi1>, vector<8x128xf32>
    %cst_24 = arith.constant dense<0.000000e+00> : vector<128xf32>
    %74 = vector.multi_reduction <add>, %73, %cst_24 [0] : vector<8x128xf32> to vector<128xf32>
    %75 = vector.shape_cast %74 : vector<128xf32> to vector<1x128xf32>
    %76 = math.log %71 : vector<1x128xf32>
    %77 = arith.addf %76, %63 : vector<1x128xf32>
    %78 = arith.subf %77, %75 : vector<1x128xf32>
    %79 = arith.mulf %78, %10 : vector<1x128xf32>
    %80 = vector.shape_cast %79 : vector<1x128xf32> to vector<1x1x128xf32>
    %cst_25 = arith.constant dense<0.000000e+00> : vector<1xf32>
    %81 = vector.multi_reduction <add>, %80, %cst_25 [1, 2] : vector<1x1x128xf32> to vector<1xf32>
    %82 = vector.shape_cast %81 : vector<1xf32> to vector<1x1x1xf32>
    %83 = vector.extract %82[0, 0, 0] : f32 from vector<1x1x1xf32>
    %84 = arith.addf %59, %83 : f32
    %c0_26 = arith.constant 0 : index
    %85 = memref.load %arg8[%c0_26] : memref<1xf32, #tpu.memory_space<smem>>
    %86 = arith.addf %85, %84 : f32
    %c0_27 = arith.constant 0 : index
    %87 = memref.load %arg8[%c0_27] : memref<1xf32, #tpu.memory_space<smem>>
    memref.store %86, %arg8[%c0_27] : memref<1xf32, #tpu.memory_space<smem>>
    %c0_i32_28 = arith.constant 0 : i32
    %88 = arith.cmpi eq, %arg0, %c0_i32_28 : i32
    %89 = arith.extui %88 : i1 to i32
    %c0_i32_29 = arith.constant 0 : i32
    %90 = arith.cmpi ne, %89, %c0_i32_29 : i32
    scf.if %90 {
      %c0_30 = arith.constant 0 : index
      %91 = memref.load %arg8[%c0_30] : memref<1xf32, #tpu.memory_space<smem>>
      %cst_31 = arith.constant 1.250000e-01 : f32
      %92 = arith.mulf %91, %cst_31 : f32
      %c0_32 = arith.constant 0 : index
      %c0_33 = arith.constant 0 : index
      %93 = memref.load %arg7[%c0_32, %c0_33] : memref<1x1xf32, #tpu.memory_space<smem>>
      memref.store %92, %arg7[%c0_32, %c0_33] : memref<1x1xf32, #tpu.memory_space<smem>>
    } else {
    }
    return
  }
  func.func @transform_0(%arg0: i32) -> (i32, i32) {
    %c0_i32 = arith.constant 0 : i32
    %c0_i32_0 = arith.constant 0 : i32
    return %c0_i32, %arg0 : i32, i32
  }
  func.func @transform_1(%arg0: i32) -> (i32, i32) {
    %c0_i32 = arith.constant 0 : i32
    %c0_i32_0 = arith.constant 0 : i32
    return %c0_i32, %arg0 : i32, i32
  }
  func.func @transform_2(%arg0: i32) -> (i32, i32) {
    %c0_i32 = arith.constant 0 : i32
    %c0_i32_0 = arith.constant 0 : i32
    return %c0_i32, %arg0 : i32, i32
  }
  func.func @transform_3(%arg0: i32) -> (i32, i32) {
    %c0_i32 = arith.constant 0 : i32
    %c0_i32_0 = arith.constant 0 : i32
    return %c0_i32, %arg0 : i32, i32
  }
  func.func @transform_4(%arg0: i32) -> (i32, i32) {
    %c0_i32 = arith.constant 0 : i32
    %c0_i32_0 = arith.constant 0 : i32
    return %c0_i32, %arg0 : i32, i32
  }
  func.func @transform_5(%arg0: i32) -> (i32, i32) {
    %c0_i32 = arith.constant 0 : i32
    %c0_i32_0 = arith.constant 0 : i32
    return %c0_i32, %arg0 : i32, i32
  }
  func.func @transform_6(%arg0: i32) -> (i32, i32) {
    %c0_i32 = arith.constant 0 : i32
    %c0_i32_0 = arith.constant 0 : i32
    %c0_i32_1 = arith.constant 0 : i32
    return %c0_i32, %c0_i32_0 : i32, i32
  }
}

</mosaic_0001>

<llo_original>
// kernel: tpu_custom_call.1
$region0: #{tpu_custom_call.1}
  #allocation0 [shape = 'u32[]', space=smem, size = 0x4, offset = 0x4, fixed_abs, tag = 'smem constant byte address 0x4 - core index']
  #allocation1 [shape = 'u32[144,128]{1,0:T(1,128)}', space=vmem, size = 0x12000, scoped, tag = 'internal scratch']
  #allocation2 [shape = 'f32[1]{0:T(128)}', space=smem, size = 0x200, scoped, tag = 'scratch operand']
  %s0 = inlined_call_operand.hbm [shape: f32[16,128], index: 0, kind: input, shape index: {}]
  %s1 = inlined_call_operand.hbm [shape: f32[32,128], index: 1, kind: input, shape index: {}]
  %s2 = inlined_call_operand.hbm [shape: f32[8,128], index: 2, kind: input, shape index: {}]
  %s3 = inlined_call_operand.vmem [shape: s32[1,128], index: 3, kind: input, shape index: {}]
  %s4 = inlined_call_operand.vmem [shape: s32[1,128], index: 4, kind: input, shape index: {}]
  %s5 = inlined_call_operand.vmem [shape: s32[1,128], index: 5, kind: input, shape index: {}]
  %s6 = inlined_call_operand.hbm [shape: f32[1,1], index: 6, kind: output, shape index: {}]
  %s7 = sld [smem:[#allocation0]]
  $region54: #{tpu_custom_call.1} parent=0
    _
  %s9 = ssub.s32 1, %s7
  %s10 = scalar_select 0, %s9, %s7
  $region1: #{tpu_custom_call.1} parent=0
    #allocation3 [shape = 'u8[8192]{0}', space=vmem, size = 0x2000, scoped, tag = 'input window, operand 0, single buffered']
    #allocation4 [shape = 's32[1]{0}', space=sflag, size = 0x4, scoped, tag = 'scoped memory for tpu_custom_call.1']
    #allocation5 [shape = 's32[1]{0}', space=sflag, size = 0x4, scoped, tag = 'scoped memory for tpu_custom_call.1']
    #allocation6 [shape = 'u8[16384]{0}', space=vmem, size = 0x4000, scoped, tag = 'input window, operand 1, single buffered']
    #allocation7 [shape = 's32[1]{0}', space=sflag, size = 0x4, scoped, tag = 'scoped memory for tpu_custom_call.1']
    #allocation8 [shape = 'u8[4096]{0}', space=vmem, size = 0x1000, scoped, tag = 'input window, operand 2, single buffered']
    #allocation9 [shape = 'u8[512]{0}', space=smem, size = 0x200, scoped, tag = 'output window, operand 0, single buffered']
    %11 = vsyncpa [#allocation4], 0
    %12 = vsyncpa [#allocation7], 0
    %13 = vsyncpa [#allocation5], 0
    // Predicated region
    $region2: #{tpu_custom_call.1} parent=1 // pred_check
      _
    $region3: #{tpu_custom_call.1} parent=1 // pred_check_branch
      %15 = sbr.rel (0) target = $region5
    $region4: #{tpu_custom_call.1} parent=1 // pred_region
      %s17 = ssub.s32 256, 256
      %18 = vsyncadd [#allocation4], %s17
      %s19 = sshll.u32 [#allocation3], 4
      %s20 = int_to_ptr.vmem [resolvable:$true] %s19
      %25 = dma.hbm_to_vmem [thread:$0]  %s0, 256, %s20, [#allocation4], 128, 128, 8
    $region5: #{tpu_custom_call.1} parent=1 // pred_fallthru
      _
    // Predicated region
    $region6: #{tpu_custom_call.1} parent=1 // pred_check
      _
    $region7: #{tpu_custom_call.1} parent=1 // pred_check_branch
      %27 = sbr.rel (0) target = $region9
    $region8: #{tpu_custom_call.1} parent=1 // pred_region
      %s29 = ssub.s32 512, 512
      %30 = vsyncadd [#allocation7], %s29
      %s31 = sshll.u32 [#allocation6], 4
      %s32 = int_to_ptr.vmem [resolvable:$true] %s31
      %37 = dma.hbm_to_vmem [thread:$0]  %s1, 512, %s32, [#allocation7], 128, 128, 8
    $region9: #{tpu_custom_call.1} parent=1 // pred_fallthru
      _
    // Predicated region
    $region10: #{tpu_custom_call.1} parent=1 // pred_check
      _
    $region11: #{tpu_custom_call.1} parent=1 // pred_check_branch
      %39 = sbr.rel (0) target = $region13
    $region12: #{tpu_custom_call.1} parent=1 // pred_region
      %s41 = ssub.s32 128, 128
      %42 = vsyncadd [#allocation7], %s41
      %s44 = sshll.u32 [#allocation8], 4
      %s45 = int_to_ptr.vmem [resolvable:$true] %s44
      %47 = dma.hbm_to_vmem [thread:$0]  %s2, 128, %s45, [#allocation7]
    $region13: #{tpu_custom_call.1} parent=1 // pred_fallthru
      _
    // Predicated region
    $region14: #{tpu_custom_call.1} parent=1 // pred_check
      _
    $region15: #{tpu_custom_call.1} parent=1 // pred_check_branch
      %49 = sbr.rel (0) target = $region17
    $region16: #{tpu_custom_call.1} parent=1 // pred_region
      _
    $region17: #{tpu_custom_call.1} parent=1 // pred_fallthru
      _
    // Predicated region
    $region18: #{tpu_custom_call.1} parent=1 // pred_check
      _
    $region19: #{tpu_custom_call.1} parent=1 // pred_check_branch
      %51 = sbr.rel (0) target = $region21
    $region20: #{tpu_custom_call.1} parent=1 // pred_region
      _
    $region21: #{tpu_custom_call.1} parent=1 // pred_fallthru
      _
    // Predicated region
    $region22: #{tpu_custom_call.1} parent=1 // pred_check
      _
    $region23: #{tpu_custom_call.1} parent=1 // pred_check_branch
      %53 = sbr.rel (0) target = $region25
    $region24: #{tpu_custom_call.1} parent=1 // pred_region
      _
    $region25: #{tpu_custom_call.1} parent=1 // pred_fallthru
      _
    // Predicated region
    $region26: #{tpu_custom_call.1} parent=1 // pred_check
      _
    $region27: #{tpu_custom_call.1} parent=1 // pred_check_branch
      %55 = sbr.rel (0) target = $region29
    $region28: #{tpu_custom_call.1} parent=1 // pred_region
      %56 = dma.done [#allocation4], 256
    $region29: #{tpu_custom_call.1} parent=1 // pred_fallthru
      _
    // Predicated region
    $region30: #{tpu_custom_call.1} parent=1 // pred_check
      _
    $region31: #{tpu_custom_call.1} parent=1 // pred_check_branch
      %58 = sbr.rel (0) target = $region33
    $region32: #{tpu_custom_call.1} parent=1 // pred_region
      %59 = dma.done [#allocation7], 512
    $region33: #{tpu_custom_call.1} parent=1 // pred_fallthru
      _
    // Predicated region
    $region34: #{tpu_custom_call.1} parent=1 // pred_check
      _
    $region35: #{tpu_custom_call.1} parent=1 // pred_check_branch
      %61 = sbr.rel (0) target = $region37
    $region36: #{tpu_custom_call.1} parent=1 // pred_region
      %62 = dma.done [#allocation7], 128
    $region37: #{tpu_custom_call.1} parent=1 // pred_fallthru
      _
    %p63 = scmp.eq.s32.totalorder 0, 0
    // Predicated region
    $region38: #{tpu_custom_call.1} parent=1 // pred_check
      %p64 = pneg %p63
    $region39: #{tpu_custom_call.1} parent=1 // pred_check_branch
      %66 = sbr.rel (%p64) target = $region41
    $region40: #{tpu_custom_call.1} parent=1 // pred_region
      %s67 = scalar_lea.smem [#allocation2], 0
      %68 = sst [smem:[%s67]] 0.0
    $region41: #{tpu_custom_call.1} parent=1 // pred_fallthru
      _
    %v69 = vlaneseq
    %v70 = vand.u32 %v69, 127
    %s71 = smul.u32 0, 128
    %v72 = vstv %s71
    %v73 = vadd.s32 %v70, %v72
    %vm74 = vcmp.lt.s32.totalorder %v73, 8
    %v75 = vsel %vm74, 1, 0
    %v76 = vcvt.s32.f32 %v75
    %v77 = vld [vmem:[#allocation3] sm:$0xff]
    %v78 = vld [vmem:[#allocation3 + $0x8] sm:$0xff]
    %v79 = vld [vmem:[%s3] sm:$0x1]
    %v80 = vmax.f32 %v77, %v78
    %v81 = vrot.slane %v80, 4
    %v82 = vmax.f32 %v80, %v81
    %v83 = vrot.slane %v82, 2
    %v84 = vmax.f32 %v82, %v83
    %v85 = vrot.slane %v84, 1
    %v86 = vmax.f32 %v84, %v85
    %v87 = vlaneseq
    %v88 = vshrl.u32 %v87, 7
    %v89 = vadd.s32 %v88, 8
    %v90 = vlaneseq
    %v91 = vshrl.u32 %v90, 7
    %v92 = vsub.s32 0, %v91
    %v93 = vrot.slane %v79, %v92
    %vm94 = vcmp.eq.s32.totalorder %v88, %v93
    %vm95 = vcmp.eq.s32.totalorder %v89, %v93
    %v96 = vsub.f32 %v77, %v86
    %v97 = vsub.f32 %v78, %v86
    %v98 = vmul.f32 %v96, 1.442695
    %v99 = vpow.pop %v98
    %v100 = vmul.f32 %v97, 1.442695
    %v101 = vpow.pop %v100
    %v102 = vadd.f32 %v99, %v101
    %v103 = vrot.slane %v102, 4
    %v104 = vadd.f32 %v102, %v103
    %v105 = vrot.slane %v104, 2
    %v106 = vadd.f32 %v104, %v105
    %v107 = vrot.slane %v106, 1
    %v108 = vadd.f32 %v106, %v107
    %v109 = vsel %vm94, %v77, 0.0
    %v110 = vsel %vm95, %v78, 0.0
    %v111 = vadd.f32 %v109, %v110
    %v112 = vrot.slane %v111, 4
    %v113 = vadd.f32 %v111, %v112
    %v114 = vrot.slane %v113, 2
    %v115 = vadd.f32 %v113, %v114
    %v116 = vrot.slane %v115, 1
    %v117 = vadd.f32 %v115, %v116
    %v118 = vlog2.pop %v108
    %v119 = vmul.f32 %v118, 0.6931472
    %v120 = vadd.f32 %v119, %v86
    %v121 = vsub.f32 %v120, %v117
    %v122 = vmul.f32 %v121, %v76
    %vm123 = vcmask 1040384
    %v124 = vsel %vm123, %v122, 0.0
    %125 = vadd.xlane.f32.xlu0 %v124
    %v126 = vpop.xlane.xlu0 %125
    %v127 = vrot.slane %v126, 4
    %v128 = vadd.f32 %v126, %v127
    %v129 = vrot.slane %v128, 2
    %v130 = vadd.f32 %v128, %v129
    %v131 = vrot.slane %v130, 1
    %v132 = vadd.f32 %v130, %v131
    %s133 = vtos %v132
    %v134 = vld [vmem:[#allocation6] sm:$0xff]
    %v135 = vld [vmem:[#allocation6 + $0x8] sm:$0xff]
    %v136 = vld [vmem:[#allocation6 + $0x10] sm:$0xff]
    %v137 = vld [vmem:[#allocation6 + $0x18] sm:$0xff]
    %v138 = vld [vmem:[%s4] sm:$0x1]
    %v139 = vmax.f32 %v134, %v135
    %v140 = vmax.f32 %v136, %v137
    %v141 = vmax.f32 %v139, %v140
    %v142 = vrot.slane %v141, 4
    %v143 = vmax.f32 %v141, %v142
    %v144 = vrot.slane %v143, 2
    %v145 = vmax.f32 %v143, %v144
    %v146 = vrot.slane %v145, 1
    %v147 = vmax.f32 %v145, %v146
    %v148 = vadd.s32 %v88, 16
    %v149 = vadd.s32 %v88, 24
    %v150 = vlaneseq
    %v151 = vshrl.u32 %v150, 7
    %v152 = vsub.s32 0, %v151
    %v153 = vrot.slane %v138, %v152
    %vm154 = vcmp.eq.s32.totalorder %v88, %v153
    %vm155 = vcmp.eq.s32.totalorder %v89, %v153
    %vm156 = vcmp.eq.s32.totalorder %v148, %v153
    %vm157 = vcmp.eq.s32.totalorder %v149, %v153
    %v158 = vsub.f32 %v134, %v147
    %v159 = vsub.f32 %v135, %v147
    %v160 = vsub.f32 %v136, %v147
    %v161 = vsub.f32 %v137, %v147
    %v162 = vmul.f32 %v158, 1.442695
    %v163 = vpow.pop %v162
    %v164 = vmul.f32 %v159, 1.442695
    %v165 = vpow.pop %v164
    %v166 = vmul.f32 %v160, 1.442695
    %v167 = vpow.pop %v166
    %v168 = vmul.f32 %v161, 1.442695
    %v169 = vpow.pop %v168
    %v170 = vadd.f32 %v163, %v165
    %v171 = vadd.f32 %v170, %v167
    %v172 = vadd.f32 %v171, %v169
    %v173 = vrot.slane %v172, 4
    %v174 = vadd.f32 %v172, %v173
    %v175 = vrot.slane %v174, 2
    %v176 = vadd.f32 %v174, %v175
    %v177 = vrot.slane %v176, 1
    %v178 = vadd.f32 %v176, %v177
    %v179 = vsel %vm154, %v134, 0.0
    %v180 = vsel %vm155, %v135, 0.0
    %v181 = vsel %vm156, %v136, 0.0
    %v182 = vsel %vm157, %v137, 0.0
    %v183 = vadd.f32 %v179, %v180
    %v184 = vadd.f32 %v183, %v181
    %v185 = vadd.f32 %v184, %v182
    %v186 = vrot.slane %v185, 4
    %v187 = vadd.f32 %v185, %v186
    %v188 = vrot.slane %v187, 2
    %v189 = vadd.f32 %v187, %v188
    %v190 = vrot.slane %v189, 1
    %v191 = vadd.f32 %v189, %v190
    %v192 = vlog2.pop %v178
    %v193 = vmul.f32 %v192, 0.6931472
    %v194 = vadd.f32 %v193, %v147
    %v195 = vsub.f32 %v194, %v191
    %v196 = vmul.f32 %v195, %v76
    %v197 = vsel %vm123, %v196, 0.0
    %198 = vadd.xlane.f32.xlu0 %v197
    %v199 = vpop.xlane.xlu0 %198
    %v200 = vrot.slane %v199, 4
    %v201 = vadd.f32 %v199, %v200
    %v202 = vrot.slane %v201, 2
    %v203 = vadd.f32 %v201, %v202
    %v204 = vrot.slane %v203, 1
    %v205 = vadd.f32 %v203, %v204
    %s206 = vtos %v205
    %s207 = sadd.f32 %s133, %s206
    %v208 = vld [vmem:[#allocation8] sm:$0xff]
    %v209 = vld [vmem:[%s5] sm:$0x1]
    %v210 = vrot.slane %v208, 4
    %v211 = vmax.f32 %v208, %v210
    %v212 = vrot.slane %v211, 2
    %v213 = vmax.f32 %v211, %v212
    %v214 = vrot.slane %v213, 1
    %v215 = vmax.f32 %v213, %v214
    %v216 = vlaneseq
    %v217 = vshrl.u32 %v216, 7
    %v218 = vsub.s32 0, %v217
    %v219 = vrot.slane %v209, %v218
    %vm220 = vcmp.eq.s32.totalorder %v88, %v219
    %v221 = vsub.f32 %v208, %v215
    %v222 = vmul.f32 %v221, 1.442695
    %v223 = vpow.pop %v222
    %v224 = vrot.slane %v223, 4
    %v225 = vadd.f32 %v223, %v224
    %v226 = vrot.slane %v225, 2
    %v227 = vadd.f32 %v225, %v226
    %v228 = vrot.slane %v227, 1
    %v229 = vadd.f32 %v227, %v228
    %v230 = vsel %vm220, %v208, 0.0
    %v231 = vrot.slane %v230, 4
    %v232 = vadd.f32 %v230, %v231
    %v233 = vrot.slane %v232, 2
    %v234 = vadd.f32 %v232, %v233
    %v235 = vrot.slane %v234, 1
    %v236 = vadd.f32 %v234, %v235
    %v237 = vlog2.pop %v229
    %v238 = vmul.f32 %v237, 0.6931472
    %v239 = vadd.f32 %v238, %v215
    %v240 = vsub.f32 %v239, %v236
    %v241 = vmul.f32 %v240, %v76
    %v242 = vsel %vm123, %v241, 0.0
    %243 = vadd.xlane.f32.xlu0 %v242
    %v244 = vpop.xlane.xlu0 %243
    %v245 = vrot.slane %v244, 4
    %v246 = vadd.f32 %v244, %v245
    %v247 = vrot.slane %v246, 2
    %v248 = vadd.f32 %v246, %v247
    %v249 = vrot.slane %v248, 1
    %v250 = vadd.f32 %v248, %v249
    %s251 = vtos %v250
    %s252 = sadd.f32 %s207, %s251
    %s253 = sld [smem:[#allocation2]]
    %s254 = sadd.f32 %s253, %s252
    %s255 = scalar_lea.smem [#allocation2], 0
    %256 = sst [smem:[%s255]] %s254
    // Predicated region
    $region42: #{tpu_custom_call.1} parent=1 // pred_check
      %p257 = pneg %p63
    $region43: #{tpu_custom_call.1} parent=1 // pred_check_branch
      %259 = sbr.rel (%p257) target = $region45
    $region44: #{tpu_custom_call.1} parent=1 // pred_region
      %s260 = sld [smem:[#allocation2]]
      %s261 = smul.f32 %s260, 0.125
      %s262 = scalar_lea.smem [#allocation9], 0
      %263 = sst [smem:[%s262]] %s261
    $region45: #{tpu_custom_call.1} parent=1 // pred_fallthru
      _
    // Predicated region
    $region46: #{tpu_custom_call.1} parent=1 // pred_check
      _
    $region47: #{tpu_custom_call.1} parent=1 // pred_check_branch
      %265 = sbr.rel (0) target = $region49
    $region48: #{tpu_custom_call.1} parent=1 // pred_region
      %s267 = ssub.s32 16, 16
      %268 = vsyncadd [#allocation5], %s267
      %271 = dma.smem_to_hbm [#allocation9], 16, %s6, [#allocation5]
    $region49: #{tpu_custom_call.1} parent=1 // pred_fallthru
      _
    // Predicated region
    $region50: #{tpu_custom_call.1} parent=1 // pred_check
      _
    $region51: #{tpu_custom_call.1} parent=1 // pred_check_branch
      %273 = sbr.rel (0) target = $region53
    $region52: #{tpu_custom_call.1} parent=1 // pred_region
      %274 = dma.done [#allocation5], 16
    $region53: #{tpu_custom_call.1} parent=1 // pred_fallthru
      _
    %275 = sfence
    %276 = vsyncpa [#allocation4], 1
    %277 = vsyncpa [#allocation7], 1
    %278 = vsyncpa [#allocation5], 1

</llo_original>
